<compile_context>
chip_gen: v6e
topology: v6e:2x2x1
jax: 0.10.0
libtpu: 0.0.40
codegen_flags: <defaults>
</compile_context>

<pallas_src>
import functools

import jax
import jax.numpy as jnp
from jax.experimental import pallas as pl
from jax.experimental.pallas import tpu as pltpu

LANE = 128  # pad the class dimension to a multiple of the lane width


def _mlp_adv_check_kernel(gt_ref, x_ref, w1_ref, b1_ref, w2_ref, b2_ref,
                          pred_ref, flag_ref, *, num_classes):
    """Fused 2-layer MLP forward + adversarial check.

    gt_ref:   SMEM (1,) int32 — ground-truth neuron index (runtime scalar).
    x_ref:    VMEM (B, D)  bf16
    w1_ref:   VMEM (D, H)  bf16
    b1_ref:   VMEM (1, H)  f32
    w2_ref:   VMEM (H, Cp) f32 (zero-padded classes)
    b2_ref:   VMEM (1, Cp) f32 (zero-padded classes)
    pred_ref: VMEM (B, Cp) f32 output (lane-dense)
    flag_ref: SMEM (1,)    int32 output (1 iff falsified)
    """
    # Layer 1: bf16 inputs on the MXU, f32 accumulation.
    h = jnp.dot(x_ref[...], w1_ref[...], preferred_element_type=jnp.float32)
    h = jnp.maximum(h + b1_ref[...], 0.0)

    # Layer 2: f32.
    pred = jnp.dot(h, w2_ref[...],
                   preferred_element_type=jnp.float32) + b2_ref[...]
    pred_ref[...] = pred

    # Adversarial check: any(y_i - y_g >= 0) over real (non-padded) i != g.
    gt = gt_ref[0]
    col = jax.lax.broadcasted_iota(jnp.int32, pred.shape, 1)
    is_gt = col == gt
    # Extract the ground-truth column via a masked cross-lane reduce
    # (robust for a dynamic lane index).
    gt_col = jnp.sum(jnp.where(is_gt, pred, 0.0), axis=-1, keepdims=True)
    valid = jnp.logical_and(jnp.logical_not(is_gt), col < num_classes)
    violated = jnp.logical_and(valid, pred - gt_col >= 0.0)
    flag_ref[0] = jnp.any(violated).astype(jnp.int32)


def _build_call(B, Cp, num_classes):
    kernel = functools.partial(_mlp_adv_check_kernel, num_classes=num_classes)
    return pl.pallas_call(
        kernel,
        out_shape=(
            jax.ShapeDtypeStruct((B, Cp), jnp.float32),   # padded predictions
            jax.ShapeDtypeStruct((1,), jnp.int32),        # falsified flag
        ),
        in_specs=[
            pl.BlockSpec(memory_space=pltpu.MemorySpace.SMEM),   # gt index
            pl.BlockSpec(memory_space=pltpu.MemorySpace.VMEM),   # x
            pl.BlockSpec(memory_space=pltpu.MemorySpace.VMEM),   # w1
            pl.BlockSpec(memory_space=pltpu.MemorySpace.VMEM),   # b1
            pl.BlockSpec(memory_space=pltpu.MemorySpace.VMEM),   # w2
            pl.BlockSpec(memory_space=pltpu.MemorySpace.VMEM),   # b2
        ],
        out_specs=(
            pl.BlockSpec(memory_space=pltpu.MemorySpace.VMEM),   # pred
            pl.BlockSpec(memory_space=pltpu.MemorySpace.SMEM),   # flag
        ),
    )


@jax.jit
def adversarial_check(x_nchw, w1, b1, w2, b2, ground_truth_neuron_index):
    """Returns (falsified: bool[], pred: (B, C) f32) as device arrays.

    No host sync is forced here; callers decide when to block / convert.
    """
    B = x_nchw.shape[0]
    x = x_nchw.reshape(B, -1)                       # flatten NCHW -> (B, D)
    H = w1.shape[1]
    C = w2.shape[1]
    Cp = max(LANE, ((C + LANE - 1) // LANE) * LANE)  # lane-dense class dim

    x_bf = x.astype(jnp.bfloat16)
    w1_bf = w1.astype(jnp.bfloat16)
    b1_f = b1.astype(jnp.float32).reshape(1, H)
    w2_p = jnp.pad(w2.astype(jnp.float32), ((0, 0), (0, Cp - C)))
    b2_p = jnp.pad(b2.astype(jnp.float32).reshape(1, C), ((0, 0), (0, Cp - C)))
    gt = jnp.asarray(ground_truth_neuron_index, dtype=jnp.int32).reshape(1)

    pred_p, flag = _build_call(B, Cp, C)(gt, x_bf, w1_bf, b1_f, w2_p, b2_p)
    return flag[0] != 0, pred_p[:, :C]


if __name__ == "__main__":
    # Small shapes consistent with the module's forward:
    # batch=2, channels=4, spatial=16x16 -> D=1024, hidden=32,
    # num_outputs=10, ground-truth neuron index = 3.
    B, Cin, Hsp, Wsp = 2, 4, 16, 16
    D = Cin * Hsp * Wsp
    HID = 32
    NUM_OUT = 10
    GT_IDX = 3

    key = jax.random.PRNGKey(0)
    k_x, k_w1, k_b1, k_w2, k_b2 = jax.random.split(key, 5)

    x = jax.random.normal(k_x, (B, Cin, Hsp, Wsp), dtype=jnp.float32)
    w1 = jax.random.normal(k_w1, (D, HID), dtype=jnp.float32) * 0.05
    b1 = jax.random.normal(k_b1, (1, HID), dtype=jnp.float32) * 0.05
    w2 = jax.random.normal(k_w2, (HID, NUM_OUT), dtype=jnp.float32) * 0.05
    b2 = jax.random.normal(k_b2, (1, NUM_OUT), dtype=jnp.float32) * 0.05

    falsified_dev, pred = adversarial_check(x, w1, b1, w2, b2, GT_IDX)
    jax.block_until_ready(pred)   # single deferred sync for the demo

    # Pure-JAX reference with the same bf16-input / f32-accumulate path.
    x_flat = x.reshape(B, -1)
    h_ref = jnp.maximum(
        jnp.dot(x_flat.astype(jnp.bfloat16), w1.astype(jnp.bfloat16),
                preferred_element_type=jnp.float32) + b1, 0.0)
    pred_ref = jnp.dot(h_ref, w2, preferred_element_type=jnp.float32) + b2
    gt_col = pred_ref[:, GT_IDX:GT_IDX + 1]
    rest = jnp.concatenate(
        (pred_ref[:, :GT_IDX], pred_ref[:, GT_IDX + 1:]), axis=1)
    falsified_ref = bool(jnp.any(rest - gt_col >= 0))

    assert pred.shape == (B, NUM_OUT)
    assert jnp.allclose(pred, pred_ref, atol=1e-3, rtol=1e-3)
    assert bool(falsified_dev) == falsified_ref

    print("KERNEL_OK")
</pallas_src>

<mosaic_0001>
module attributes {stable_mosaic.version = 11 : i64} {
  func.func @_mlp_adv_check_kernel(%arg0: memref<1xi32, #tpu.memory_space<smem>>, %arg1: memref<2x1024xbf16, #tpu.memory_space<vmem>>, %arg2: memref<1024x32xbf16, #tpu.memory_space<vmem>>, %arg3: memref<1x32xf32, #tpu.memory_space<vmem>>, %arg4: memref<32x128xf32, #tpu.memory_space<vmem>>, %arg5: memref<1x128xf32, #tpu.memory_space<vmem>>, %arg6: memref<2x128xf32, #tpu.memory_space<vmem>>, %arg7: memref<1xi32, #tpu.memory_space<smem>>) attributes {dimension_semantics = [], scalar_prefetch = 0 : i64, scratch_operands = 0 : i64, tpu.core_type = #tpu.core_type<tc>} {
    %c0 = arith.constant 0 : index
    %c0_0 = arith.constant 0 : index
    %0 = vector.load %arg1[%c0, %c0_0] : memref<2x1024xbf16, #tpu.memory_space<vmem>>, vector<2x1024xbf16>
    %c0_1 = arith.constant 0 : index
    %c0_2 = arith.constant 0 : index
    %1 = vector.load %arg2[%c0_1, %c0_2] : memref<1024x32xbf16, #tpu.memory_space<vmem>>, vector<1024x32xbf16>
    %cst = arith.constant dense<0.000000e+00> : vector<2x32xf32>
    %2 = tpu.matmul %0, %1, %cst {dimension_numbers = #tpu.dot_dimension_numbers<[1], [0], [0], [1], [0, 0, 1, 1], [], []>} : vector<2x1024xbf16>, vector<1024x32xbf16>, vector<2x32xf32> -> vector<2x32xf32>
    %c0_3 = arith.constant 0 : index
    %c0_4 = arith.constant 0 : index
    %3 = vector.load %arg3[%c0_3, %c0_4] : memref<1x32xf32, #tpu.memory_space<vmem>>, vector<1x32xf32>
    %4 = vector.broadcast %3 : vector<1x32xf32> to vector<2x32xf32>
    %5 = arith.addf %2, %4 : vector<2x32xf32>
    %cst_5 = arith.constant 0.000000e+00 : f32
    %6 = vector.broadcast %cst_5 : f32 to vector<2x32xf32>
    %7 = arith.maximumf %5, %6 : vector<2x32xf32>
    %c0_6 = arith.constant 0 : index
    %c0_7 = arith.constant 0 : index
    %8 = vector.load %arg4[%c0_6, %c0_7] : memref<32x128xf32, #tpu.memory_space<vmem>>, vector<32x128xf32>
    %cst_8 = arith.constant dense<0.000000e+00> : vector<2x128xf32>
    %9 = tpu.matmul %7, %8, %cst_8 {dimension_numbers = #tpu.dot_dimension_numbers<[1], [0], [0], [1], [0, 0, 1, 1], [], []>} : vector<2x32xf32>, vector<32x128xf32>, vector<2x128xf32> -> vector<2x128xf32>
    %c0_9 = arith.constant 0 : index
    %c0_10 = arith.constant 0 : index
    %10 = vector.load %arg5[%c0_9, %c0_10] : memref<1x128xf32, #tpu.memory_space<vmem>>, vector<1x128xf32>
    %11 = vector.broadcast %10 : vector<1x128xf32> to vector<2x128xf32>
    %12 = arith.addf %9, %11 : vector<2x128xf32>
    %c0_11 = arith.constant 0 : index
    %c0_12 = arith.constant 0 : index
    %13 = vector.load %arg6[%c0_11, %c0_12] : memref<2x128xf32, #tpu.memory_space<vmem>>, vector<2x128xf32>
    tpu.vector_store %arg6[%c0_11, %c0_12], %12 {strides = array<i32>} : memref<2x128xf32, #tpu.memory_space<vmem>>, vector<2x128xf32>,
    %c0_13 = arith.constant 0 : index
    %14 = memref.load %arg0[%c0_13] : memref<1xi32, #tpu.memory_space<smem>>
    %15 = tpu.iota {dimensions = array<i32: 1>} : vector<2x128xi32>
    %16 = vector.broadcast %14 : i32 to vector<2x128xi32>
    %17 = arith.cmpi eq, %15, %16 : vector<2x128xi32>
    %cst_14 = arith.constant 0.000000e+00 : f32
    %18 = vector.broadcast %cst_14 : f32 to vector<2x128xf32>
    %19 = arith.select %17, %12, %18 : vector<2x128xi1>, vector<2x128xf32>
    %cst_15 = arith.constant dense<0.000000e+00> : vector<2xf32>
    %20 = vector.multi_reduction <add>, %19, %cst_15 [1] : vector<2x128xf32> to vector<2xf32>
    %21 = vector.shape_cast %20 : vector<2xf32> to vector<2x1xf32>
    %cst_16 = arith.constant dense<true> : vector<2x128xi1>
    %22 = arith.xori %17, %cst_16 : vector<2x128xi1>
    %c10_i32 = arith.constant 10 : i32
    %23 = vector.broadcast %c10_i32 : i32 to vector<2x128xi32>
    %24 = arith.cmpi slt, %15, %23 : vector<2x128xi32>
    %25 = arith.andi %22, %24 : vector<2x128xi1>
    %26 = vector.broadcast %21 : vector<2x1xf32> to vector<2x128xf32>
    %27 = arith.subf %12, %26 : vector<2x128xf32>
    %cst_17 = arith.constant 0.000000e+00 : f32
    %28 = vector.broadcast %cst_17 : f32 to vector<2x128xf32>
    %29 = arith.cmpf oge, %27, %28 : vector<2x128xf32>
    %30 = arith.andi %25, %29 : vector<2x128xi1>
    %cst_18 = arith.constant 1.000000e+00 : f32
    %cst_19 = arith.constant 0.000000e+00 : f32
    %31 = vector.broadcast %cst_18 : f32 to vector<2x128xf32>
    %32 = vector.broadcast %cst_19 : f32 to vector<2x128xf32>
    %33 = arith.select %30, %31, %32 : vector<2x128xi1>, vector<2x128xf32>
    %34 = vector.shape_cast %33 : vector<2x128xf32> to vector<1x2x128xf32>
    %cst_20 = arith.constant dense<0xFF800000> : vector<1xf32>
    %35 = vector.multi_reduction <maximumf>, %34, %cst_20 [1, 2] : vector<1x2x128xf32> to vector<1xf32>
    %36 = vector.shape_cast %35 : vector<1xf32> to vector<1x1x1xf32>
    %37 = vector.extract %36[0, 0, 0] : f32 from vector<1x1x1xf32>
    %cst_21 = arith.constant 0.000000e+00 : f32
    %38 = arith.cmpf ogt, %37, %cst_21 : f32
    %39 = arith.extui %38 : i1 to i32
    %c0_22 = arith.constant 0 : index
    %40 = memref.load %arg7[%c0_22] : memref<1xi32, #tpu.memory_space<smem>>
    memref.store %39, %arg7[%c0_22] : memref<1xi32, #tpu.memory_space<smem>>
    return
  }
}

</mosaic_0001>

<llo_original>
// kernel: adversarial_check.1
$region0: #{adversarial_check.1}
  #allocation0 [shape = 'u32[]', space=smem, size = 0x4, offset = 0x4, fixed_abs, tag = 'smem constant byte address 0x4 - core index']
  #allocation1 [shape = 'u32[144,128]{1,0:T(1,128)}', space=vmem, size = 0x12000, scoped, tag = 'internal scratch']
  #allocation2 [shape = 's32[1]{0:T(128)S(6)}', space=smem, size = 0x200, scoped, tag = 'scoped memory for adversarial_check.1']
  %s0 = inlined_call_operand.<no memory space> [shape: s32[1], index: 0, kind: input, shape index: {}]
  %s1 = inlined_call_operand.vmem [shape: bf16[2,1024], index: 1, kind: input, shape index: {}]
  %s2 = inlined_call_operand.vmem [shape: bf16[1024,32], index: 2, kind: input, shape index: {}]
  %s3 = inlined_call_operand.vmem [shape: f32[1,32], index: 3, kind: input, shape index: {}]
  %s4 = inlined_call_operand.vmem [shape: f32[32,128], index: 4, kind: input, shape index: {}]
  %s5 = inlined_call_operand.vmem [shape: f32[1,128], index: 5, kind: input, shape index: {}]
  %s6 = inlined_call_operand.hbm [shape: f32[2,128], index: 6, kind: output, shape index: {0}]
  %s7 = inlined_call_operand.hbm [shape: s32[1], index: 7, kind: output, shape index: {1}]
  %8 = xla_tuple %s6, %s7
  %s9 = sld [smem:[#allocation0]]
  $region42: #{adversarial_check.1} parent=0
    _
  %s11 = ssub.s32 1, %s9
  %s12 = scalar_select 0, %s11, %s9
  %13 = sst [smem:[#allocation2]] %s0
  $region1: #{adversarial_check.1} parent=0
    #allocation3 [shape = 'u8[1024]{0}', space=vmem, size = 0x400, scoped, tag = 'output window, operand 0, single buffered']
    #allocation4 [shape = 's32[1]{0}', space=sflag, size = 0x4, scoped, tag = 'scoped memory for adversarial_check.1']
    #allocation5 [shape = 's32[1]{0}', space=sflag, size = 0x4, scoped, tag = 'scoped memory for adversarial_check.1']
    #allocation6 [shape = 'u8[512]{0}', space=smem, size = 0x200, scoped, tag = 'output window, operand 1, single buffered']
    %14 = vsyncpa [#allocation4], 0
    %15 = vsyncpa [#allocation5], 0
    // Predicated region
    $region2: #{adversarial_check.1} parent=1 // pred_check
      _
    $region3: #{adversarial_check.1} parent=1 // pred_check_branch
      %17 = sbr.rel (0) target = $region5
    $region4: #{adversarial_check.1} parent=1 // pred_region
      _
    $region5: #{adversarial_check.1} parent=1 // pred_fallthru
      _
    // Predicated region
    $region6: #{adversarial_check.1} parent=1 // pred_check
      _
    $region7: #{adversarial_check.1} parent=1 // pred_check_branch
      %19 = sbr.rel (0) target = $region9
    $region8: #{adversarial_check.1} parent=1 // pred_region
      _
    $region9: #{adversarial_check.1} parent=1 // pred_fallthru
      _
    // Predicated region
    $region10: #{adversarial_check.1} parent=1 // pred_check
      _
    $region11: #{adversarial_check.1} parent=1 // pred_check_branch
      %21 = sbr.rel (0) target = $region13
    $region12: #{adversarial_check.1} parent=1 // pred_region
      _
    $region13: #{adversarial_check.1} parent=1 // pred_fallthru
      _
    // Predicated region
    $region14: #{adversarial_check.1} parent=1 // pred_check
      _
    $region15: #{adversarial_check.1} parent=1 // pred_check_branch
      %23 = sbr.rel (0) target = $region17
    $region16: #{adversarial_check.1} parent=1 // pred_region
      _
    $region17: #{adversarial_check.1} parent=1 // pred_fallthru
      _
    // Predicated region
    $region18: #{adversarial_check.1} parent=1 // pred_check
      _
    $region19: #{adversarial_check.1} parent=1 // pred_check_branch
      %25 = sbr.rel (0) target = $region21
    $region20: #{adversarial_check.1} parent=1 // pred_region
      _
    $region21: #{adversarial_check.1} parent=1 // pred_fallthru
      _
    // Predicated region
    $region22: #{adversarial_check.1} parent=1 // pred_check
      _
    $region23: #{adversarial_check.1} parent=1 // pred_check_branch
      %27 = sbr.rel (0) target = $region25
    $region24: #{adversarial_check.1} parent=1 // pred_region
      _
    $region25: #{adversarial_check.1} parent=1 // pred_fallthru
      _
    %v29 = vld [vmem:[%s1] sm:$0xff]
    %v30 = vld [vmem:[%s2] sm:$0xf]
    %v31 = vld [vmem:[%s2 + $0x4] sm:$0xf]
    %v32 = vld [vmem:[%s2 + $0x8] sm:$0xf]
    %v33 = vld [vmem:[%s2 + $0xc] sm:$0xf]
    %v34 = vld [vmem:[%s2 + $0x10] sm:$0xf]
    %v35 = vld [vmem:[%s2 + $0x14] sm:$0xf]
    %v36 = vld [vmem:[%s2 + $0x18] sm:$0xf]
    %v37 = vld [vmem:[%s2 + $0x1c] sm:$0xf]
    %v38 = vld [vmem:[%s2 + $0x20] sm:$0xf]
    %v39 = vld [vmem:[%s2 + $0x24] sm:$0xf]
    %v40 = vld [vmem:[%s2 + $0x28] sm:$0xf]
    %v41 = vld [vmem:[%s2 + $0x2c] sm:$0xf]
    %v42 = vld [vmem:[%s2 + $0x30] sm:$0xf]
    %v43 = vld [vmem:[%s2 + $0x34] sm:$0xf]
    %v44 = vld [vmem:[%s2 + $0x38] sm:$0xf]
    %v45 = vld [vmem:[%s2 + $0x3c] sm:$0xf]
    %v46 = vld [vmem:[%s2 + $0x40] sm:$0xf]
    %v47 = vld [vmem:[%s2 + $0x44] sm:$0xf]
    %v48 = vld [vmem:[%s2 + $0x48] sm:$0xf]
    %v49 = vld [vmem:[%s2 + $0x4c] sm:$0xf]
    %v50 = vld [vmem:[%s2 + $0x50] sm:$0xf]
    %v51 = vld [vmem:[%s2 + $0x54] sm:$0xf]
    %v52 = vld [vmem:[%s2 + $0x58] sm:$0xf]
    %v53 = vld [vmem:[%s2 + $0x5c] sm:$0xf]
    %v54 = vld [vmem:[%s2 + $0x60] sm:$0xf]
    %v55 = vld [vmem:[%s2 + $0x64] sm:$0xf]
    %v56 = vld [vmem:[%s2 + $0x68] sm:$0xf]
    %v57 = vld [vmem:[%s2 + $0x6c] sm:$0xf]
    %v58 = vld [vmem:[%s2 + $0x70] sm:$0xf]
    %v59 = vld [vmem:[%s2 + $0x74] sm:$0xf]
    %v60 = vld [vmem:[%s2 + $0x78] sm:$0xf]
    %v61 = vld [vmem:[%s2 + $0x7c] sm:$0xf]
    %v62 = vld [vmem:[%s2 + $0x80] sm:$0xf]
    %v63 = vld [vmem:[%s2 + $0x84] sm:$0xf]
    %v64 = vld [vmem:[%s2 + $0x88] sm:$0xf]
    %v65 = vld [vmem:[%s2 + $0x8c] sm:$0xf]
    %v66 = vld [vmem:[%s2 + $0x90] sm:$0xf]
    %v67 = vld [vmem:[%s2 + $0x94] sm:$0xf]
    %v68 = vld [vmem:[%s2 + $0x98] sm:$0xf]
    %v69 = vld [vmem:[%s2 + $0x9c] sm:$0xf]
    %v70 = vld [vmem:[%s2 + $0xa0] sm:$0xf]
    %v71 = vld [vmem:[%s2 + $0xa4] sm:$0xf]
    %v72 = vld [vmem:[%s2 + $0xa8] sm:$0xf]
    %v73 = vld [vmem:[%s2 + $0xac] sm:$0xf]
    %v74 = vld [vmem:[%s2 + $0xb0] sm:$0xf]
    %v75 = vld [vmem:[%s2 + $0xb4] sm:$0xf]
    %v76 = vld [vmem:[%s2 + $0xb8] sm:$0xf]
    %v77 = vld [vmem:[%s2 + $0xbc] sm:$0xf]
    %v78 = vld [vmem:[%s2 + $0xc0] sm:$0xf]
    %v79 = vld [vmem:[%s2 + $0xc4] sm:$0xf]
    %v80 = vld [vmem:[%s2 + $0xc8] sm:$0xf]
    %v81 = vld [vmem:[%s2 + $0xcc] sm:$0xf]
    %v82 = vld [vmem:[%s2 + $0xd0] sm:$0xf]
    %v83 = vld [vmem:[%s2 + $0xd4] sm:$0xf]
    %v84 = vld [vmem:[%s2 + $0xd8] sm:$0xf]
    %v85 = vld [vmem:[%s2 + $0xdc] sm:$0xf]
    %v86 = vld [vmem:[%s2 + $0xe0] sm:$0xf]
    %v87 = vld [vmem:[%s2 + $0xe4] sm:$0xf]
    %v88 = vld [vmem:[%s2 + $0xe8] sm:$0xf]
    %v89 = vld [vmem:[%s2 + $0xec] sm:$0xf]
    %v90 = vld [vmem:[%s2 + $0xf0] sm:$0xf]
    %v91 = vld [vmem:[%s2 + $0xf4] sm:$0xf]
    %v92 = vld [vmem:[%s2 + $0xf8] sm:$0xf]
    %v93 = vld [vmem:[%s2 + $0xfc] sm:$0xf]
    %v94 = vld [vmem:[%s2 + $0x100] sm:$0xf]
    %v95 = vld [vmem:[%s2 + $0x104] sm:$0xf]
    %v96 = vld [vmem:[%s2 + $0x108] sm:$0xf]
    %v97 = vld [vmem:[%s2 + $0x10c] sm:$0xf]
    %v98 = vld [vmem:[%s2 + $0x110] sm:$0xf]
    %v99 = vld [vmem:[%s2 + $0x114] sm:$0xf]
    %v100 = vld [vmem:[%s2 + $0x118] sm:$0xf]
    %v101 = vld [vmem:[%s2 + $0x11c] sm:$0xf]
    %v102 = vld [vmem:[%s2 + $0x120] sm:$0xf]
    %v103 = vld [vmem:[%s2 + $0x124] sm:$0xf]
    %v104 = vld [vmem:[%s2 + $0x128] sm:$0xf]
    %v105 = vld [vmem:[%s2 + $0x12c] sm:$0xf]
    %v106 = vld [vmem:[%s2 + $0x130] sm:$0xf]
    %v107 = vld [vmem:[%s2 + $0x134] sm:$0xf]
    %v108 = vld [vmem:[%s2 + $0x138] sm:$0xf]
    %v109 = vld [vmem:[%s2 + $0x13c] sm:$0xf]
    %v110 = vld [vmem:[%s2 + $0x140] sm:$0xf]
    %v111 = vld [vmem:[%s2 + $0x144] sm:$0xf]
    %v112 = vld [vmem:[%s2 + $0x148] sm:$0xf]
    %v113 = vld [vmem:[%s2 + $0x14c] sm:$0xf]
    %v114 = vld [vmem:[%s2 + $0x150] sm:$0xf]
    %v115 = vld [vmem:[%s2 + $0x154] sm:$0xf]
    %v116 = vld [vmem:[%s2 + $0x158] sm:$0xf]
    %v117 = vld [vmem:[%s2 + $0x15c] sm:$0xf]
    %v118 = vld [vmem:[%s2 + $0x160] sm:$0xf]
    %v119 = vld [vmem:[%s2 + $0x164] sm:$0xf]
    %v120 = vld [vmem:[%s2 + $0x168] sm:$0xf]
    %v121 = vld [vmem:[%s2 + $0x16c] sm:$0xf]
    %v122 = vld [vmem:[%s2 + $0x170] sm:$0xf]
    %v123 = vld [vmem:[%s2 + $0x174] sm:$0xf]
    %v124 = vld [vmem:[%s2 + $0x178] sm:$0xf]
    %v125 = vld [vmem:[%s2 + $0x17c] sm:$0xf]
    %v126 = vld [vmem:[%s2 + $0x180] sm:$0xf]
    %v127 = vld [vmem:[%s2 + $0x184] sm:$0xf]
    %v128 = vld [vmem:[%s2 + $0x188] sm:$0xf]
    %v129 = vld [vmem:[%s2 + $0x18c] sm:$0xf]
    %v130 = vld [vmem:[%s2 + $0x190] sm:$0xf]
    %v131 = vld [vmem:[%s2 + $0x194] sm:$0xf]
    %v132 = vld [vmem:[%s2 + $0x198] sm:$0xf]
    %v133 = vld [vmem:[%s2 + $0x19c] sm:$0xf]
    %v134 = vld [vmem:[%s2 + $0x1a0] sm:$0xf]
    %v135 = vld [vmem:[%s2 + $0x1a4] sm:$0xf]
    %v136 = vld [vmem:[%s2 + $0x1a8] sm:$0xf]
    %v137 = vld [vmem:[%s2 + $0x1ac] sm:$0xf]
    %v138 = vld [vmem:[%s2 + $0x1b0] sm:$0xf]
    %v139 = vld [vmem:[%s2 + $0x1b4] sm:$0xf]
    %v140 = vld [vmem:[%s2 + $0x1b8] sm:$0xf]
    %v141 = vld [vmem:[%s2 + $0x1bc] sm:$0xf]
    %v142 = vld [vmem:[%s2 + $0x1c0] sm:$0xf]
    %v143 = vld [vmem:[%s2 + $0x1c4] sm:$0xf]
    %v144 = vld [vmem:[%s2 + $0x1c8] sm:$0xf]
    %v145 = vld [vmem:[%s2 + $0x1cc] sm:$0xf]
    %v146 = vld [vmem:[%s2 + $0x1d0] sm:$0xf]
    %v147 = vld [vmem:[%s2 + $0x1d4] sm:$0xf]
    %v148 = vld [vmem:[%s2 + $0x1d8] sm:$0xf]
    %v149 = vld [vmem:[%s2 + $0x1dc] sm:$0xf]
    %v150 = vld [vmem:[%s2 + $0x1e0] sm:$0xf]
    %v151 = vld [vmem:[%s2 + $0x1e4] sm:$0xf]
    %v152 = vld [vmem:[%s2 + $0x1e8] sm:$0xf]
    %v153 = vld [vmem:[%s2 + $0x1ec] sm:$0xf]
    %v154 = vld [vmem:[%s2 + $0x1f0] sm:$0xf]
    %v155 = vld [vmem:[%s2 + $0x1f4] sm:$0xf]
    %v156 = vld [vmem:[%s2 + $0x1f8] sm:$0xf]
    %v157 = vld [vmem:[%s2 + $0x1fc] sm:$0xf]
    %v158 = vld [vmem:[%s3] sm:$0x1]
    %v160 = vlaneseq
    %v161 = vshrl.u32 %v160, 7
    %v162 = vsub.s32 0, %v161
    %v163 = vrot.slane %v158, %v162
    %v166 = vcombine.high %v29, %v29
    %v168 = vunpack.c.l.s4 1966171168
    %v169 = vunpack.c.0.s8 %v168
    %v170 = vlaneseq
    %v171 = vshrl.u32 %v170, 7
    %v172 = vsub.s32 %v169, %v171
    %v173 = vrot.slane %v29, %v172
    %v175 = vunpack.c.l.s4 1966171168
    %v176 = vunpack.c.0.s8 %v175
    %v177 = vlaneseq
    %v178 = vshrl.u32 %v177, 7
    %v179 = vsub.s32 %v176, %v178
    %v180 = vrot.slane %v166, %v179
    %v181 = vcombine.high %v173, %v173
    %v182 = vcombine.high %v180, %v180
    %v184 = vunpack.c.l.s4 1966171168
    %v185 = vunpack.c.0.s8 %v184
    %v186 = vlaneseq
    %v187 = vshrl.u32 %v186, 7
    %v188 = vsub.s32 %v185, %v187
    %v189 = vrot.slane %v173, %v188
    %v191 = vunpack.c.l.s4 1966171168
    %v192 = vunpack.c.0.s8 %v191
    %v193 = vlaneseq
    %v194 = vshrl.u32 %v193, 7
    %v195 = vsub.s32 %v192, %v194
    %v196 = vrot.slane %v180, %v195
    %v198 = vunpack.c.l.s4 1966171168
    %v199 = vunpack.c.0.s8 %v198
    %v200 = vlaneseq
    %v201 = vshrl.u32 %v200, 7
    %v202 = vsub.s32 %v199, %v201
    %v203 = vrot.slane %v181, %v202
    %v205 = vunpack.c.l.s4 1966171168
    %v206 = vunpack.c.0.s8 %v205
    %v207 = vlaneseq
    %v208 = vshrl.u32 %v207, 7
    %v209 = vsub.s32 %v206, %v208
    %v210 = vrot.slane %v182, %v209
    %v211 = vcombine.high %v189, %v189
    %v212 = vcombine.high %v196, %v196
    %v213 = vcombine.high %v203, %v203
    %v214 = vcombine.high %v210, %v210
    %v351 = vunpack.c.l.b16 %v30
    %v352 = vunpack.c.l.b16 %v31
    %v353 = vunpack.c.l.b16 %v32
    %v354 = vunpack.c.l.b16 %v33
    %v355 = vunpack.c.l.b16 %v34
    %v356 = vunpack.c.l.b16 %v35
    %v357 = vunpack.c.l.b16 %v36
    %v358 = vunpack.c.l.b16 %v37
    %v359 = vunpack.c.l.b16 %v38
    %v360 = vunpack.c.l.b16 %v39
    %v361 = vunpack.c.l.b16 %v40
    %v362 = vunpack.c.l.b16 %v41
    %v363 = vunpack.c.l.b16 %v42
    %v364 = vunpack.c.l.b16 %v43
    %v365 = vunpack.c.l.b16 %v44
    %v366 = vunpack.c.l.b16 %v45
    %v367 = vunpack.c.l.b16 %v46
    %v368 = vunpack.c.l.b16 %v47
    %v369 = vunpack.c.l.b16 %v48
    %v370 = vunpack.c.l.b16 %v49
    %v371 = vunpack.c.l.b16 %v50
    %v372 = vunpack.c.l.b16 %v51
    %v373 = vunpack.c.l.b16 %v52
    %v374 = vunpack.c.l.b16 %v53
    %v375 = vunpack.c.l.b16 %v54
    %v376 = vunpack.c.l.b16 %v55
    %v377 = vunpack.c.l.b16 %v56
    %v378 = vunpack.c.l.b16 %v57
    %v379 = vunpack.c.l.b16 %v58
    %v380 = vunpack.c.l.b16 %v59
    %v381 = vunpack.c.l.b16 %v60
    %v382 = vunpack.c.l.b16 %v61
    %v383 = vunpack.c.l.b16 %v62
    %v384 = vunpack.c.l.b16 %v63
    %v385 = vunpack.c.l.b16 %v64
    %v386 = vunpack.c.l.b16 %v65
    %v387 = vunpack.c.l.b16 %v66
    %v388 = vunpack.c.l.b16 %v67
    %v389 = vunpack.c.l.b16 %v68
    %v390 = vunpack.c.l.b16 %v69
    %v391 = vunpack.c.l.b16 %v70
    %v392 = vunpack.c.l.b16 %v71
    %v393 = vunpack.c.l.b16 %v72
    %v394 = vunpack.c.l.b16 %v73
    %v395 = vunpack.c.l.b16 %v74
    %v396 = vunpack.c.l.b16 %v75
    %v397 = vunpack.c.l.b16 %v76
    %v398 = vunpack.c.l.b16 %v77
    %v399 = vunpack.c.l.b16 %v78
    %v400 = vunpack.c.l.b16 %v79
    %v401 = vunpack.c.l.b16 %v80
    %v402 = vunpack.c.l.b16 %v81
    %v403 = vunpack.c.l.b16 %v82
    %v404 = vunpack.c.l.b16 %v83
    %v405 = vunpack.c.l.b16 %v84
    %v406 = vunpack.c.l.b16 %v85
    %v407 = vunpack.c.l.b16 %v86
    %v408 = vunpack.c.l.b16 %v87
    %v409 = vunpack.c.l.b16 %v88
    %v410 = vunpack.c.l.b16 %v89
    %v411 = vunpack.c.l.b16 %v90
    %v412 = vunpack.c.l.b16 %v91
    %v413 = vunpack.c.l.b16 %v92
    %v414 = vunpack.c.l.b16 %v93
    %v415 = vunpack.c.l.b16 %v94
    %v416 = vunpack.c.l.b16 %v95
    %v417 = vunpack.c.l.b16 %v96
    %v418 = vunpack.c.l.b16 %v97
    %v419 = vunpack.c.l.b16 %v98
    %v420 = vunpack.c.l.b16 %v99
    %v421 = vunpack.c.l.b16 %v100
    %v422 = vunpack.c.l.b16 %v101
    %v423 = vunpack.c.l.b16 %v102
    %v424 = vunpack.c.l.b16 %v103
    %v425 = vunpack.c.l.b16 %v104
    %v426 = vunpack.c.l.b16 %v105
    %v427 = vunpack.c.l.b16 %v106
    %v428 = vunpack.c.l.b16 %v107
    %v429 = vunpack.c.l.b16 %v108
    %v430 = vunpack.c.l.b16 %v109
    %v431 = vunpack.c.l.b16 %v110
    %v432 = vunpack.c.l.b16 %v111
    %v433 = vunpack.c.l.b16 %v112
    %v434 = vunpack.c.l.b16 %v113
    %v435 = vunpack.c.l.b16 %v114
    %v436 = vunpack.c.l.b16 %v115
    %v437 = vunpack.c.l.b16 %v116
    %v438 = vunpack.c.l.b16 %v117
    %v439 = vunpack.c.l.b16 %v118
    %v440 = vunpack.c.l.b16 %v119
    %v441 = vunpack.c.l.b16 %v120
    %v442 = vunpack.c.l.b16 %v121
    %v443 = vunpack.c.l.b16 %v122
    %v444 = vunpack.c.l.b16 %v123
    %v445 = vunpack.c.l.b16 %v124
    %v446 = vunpack.c.l.b16 %v125
    %v447 = vunpack.c.l.b16 %v126
    %v448 = vunpack.c.l.b16 %v127
    %v449 = vunpack.c.l.b16 %v128
    %v450 = vunpack.c.l.b16 %v129
    %v451 = vunpack.c.l.b16 %v130
    %v452 = vunpack.c.l.b16 %v131
    %v453 = vunpack.c.l.b16 %v132
    %v454 = vunpack.c.l.b16 %v133
    %v455 = vunpack.c.l.b16 %v134
    %v456 = vunpack.c.l.b16 %v135
    %v457 = vunpack.c.l.b16 %v136
    %v458 = vunpack.c.l.b16 %v137
    %v459 = vunpack.c.l.b16 %v138
    %v460 = vunpack.c.l.b16 %v139
    %v461 = vunpack.c.l.b16 %v140
    %v462 = vunpack.c.l.b16 %v141
    %v463 = vunpack.c.l.b16 %v142
    %v464 = vunpack.c.l.b16 %v143
    %v465 = vunpack.c.l.b16 %v144
    %v466 = vunpack.c.l.b16 %v145
    %v467 = vunpack.c.l.b16 %v146
    %v468 = vunpack.c.l.b16 %v147
    %v469 = vunpack.c.l.b16 %v148
    %v470 = vunpack.c.l.b16 %v149
    %v471 = vunpack.c.l.b16 %v150
    %v472 = vunpack.c.l.b16 %v151
    %v473 = vunpack.c.l.b16 %v152
    %v474 = vunpack.c.l.b16 %v153
    %v475 = vunpack.c.l.b16 %v154
    %v476 = vunpack.c.l.b16 %v155
    %v477 = vunpack.c.l.b16 %v156
    %v478 = vunpack.c.l.b16 %v157
    %v479 = vpack.c.b16 %v352, %v351
    %v480 = vpack.c.b16 %v354, %v353
    %v481 = vpack.c.b16 %v356, %v355
    %v482 = vpack.c.b16 %v358, %v357
    %v483 = vpack.c.b16 %v360, %v359
    %v484 = vpack.c.b16 %v362, %v361
    %v485 = vpack.c.b16 %v364, %v363
    %v486 = vpack.c.b16 %v366, %v365
    %v487 = vpack.c.b16 %v368, %v367
    %v488 = vpack.c.b16 %v370, %v369
    %v489 = vpack.c.b16 %v372, %v371
    %v490 = vpack.c.b16 %v374, %v373
    %v491 = vpack.c.b16 %v376, %v375
    %v492 = vpack.c.b16 %v378, %v377
    %v493 = vpack.c.b16 %v380, %v379
    %v494 = vpack.c.b16 %v382, %v381
    %v495 = vpack.c.b16 %v384, %v383
    %v496 = vpack.c.b16 %v386, %v385
    %v497 = vpack.c.b16 %v388, %v387
    %v498 = vpack.c.b16 %v390, %v389
    %v499 = vpack.c.b16 %v392, %v391
    %v500 = vpack.c.b16 %v394, %v393
    %v501 = vpack.c.b16 %v396, %v395
    %v502 = vpack.c.b16 %v398, %v397
    %v503 = vpack.c.b16 %v400, %v399
    %v504 = vpack.c.b16 %v402, %v401
    %v505 = vpack.c.b16 %v404, %v403
    %v506 = vpack.c.b16 %v406, %v405
    %v507 = vpack.c.b16 %v408, %v407
    %v508 = vpack.c.b16 %v410, %v409
    %v509 = vpack.c.b16 %v412, %v411
    %v510 = vpack.c.b16 %v414, %v413
    %v511 = vpack.c.b16 %v416, %v415
    %v512 = vpack.c.b16 %v418, %v417
    %v513 = vpack.c.b16 %v420, %v419
    %v514 = vpack.c.b16 %v422, %v421
    %v515 = vpack.c.b16 %v424, %v423
    %v516 = vpack.c.b16 %v426, %v425
    %v517 = vpack.c.b16 %v428, %v427
    %v518 = vpack.c.b16 %v430, %v429
    %v519 = vpack.c.b16 %v432, %v431
    %v520 = vpack.c.b16 %v434, %v433
    %v521 = vpack.c.b16 %v436, %v435
    %v522 = vpack.c.b16 %v438, %v437
    %v523 = vpack.c.b16 %v440, %v439
    %v524 = vpack.c.b16 %v442, %v441
    %v525 = vpack.c.b16 %v444, %v443
    %v526 = vpack.c.b16 %v446, %v445
    %v527 = vpack.c.b16 %v448, %v447
    %v528 = vpack.c.b16 %v450, %v449
    %v529 = vpack.c.b16 %v452, %v451
    %v530 = vpack.c.b16 %v454, %v453
    %v531 = vpack.c.b16 %v456, %v455
    %v532 = vpack.c.b16 %v458, %v457
    %v533 = vpack.c.b16 %v460, %v459
    %v534 = vpack.c.b16 %v462, %v461
    %v535 = vpack.c.b16 %v464, %v463
    %v536 = vpack.c.b16 %v466, %v465
    %v537 = vpack.c.b16 %v468, %v467
    %v538 = vpack.c.b16 %v470, %v469
    %v539 = vpack.c.b16 %v472, %v471
    %v540 = vpack.c.b16 %v474, %v473
    %v541 = vpack.c.b16 %v476, %v475
    %v542 = vpack.c.b16 %v478, %v477
    %607 = vmatprep.subr.bf16.mxu0 0
    %608 = vmatpush1.bf16.msra.mxu0 %v486
    %609 = vmatprep.subr.bf16.mxu0 0
    %610 = vmatpush1.bf16.msra.mxu0 %v485
    %611 = vmatprep.subr.bf16.mxu0 0
    %612 = vmatpush1.bf16.msra.mxu0 %v484
    %613 = vmatprep.subr.bf16.mxu0 0
    %614 = vmatpush1.bf16.msra.mxu0 %v483
    %615 = vmatprep.subr.bf16.mxu0 0
    %616 = vmatpush1.bf16.msra.mxu0 %v482
    %617 = vmatprep.subr.bf16.mxu0 0
    %618 = vmatpush1.bf16.msra.mxu0 %v481
    %619 = vmatprep.subr.bf16.mxu0 0
    %620 = vmatpush1.bf16.msra.mxu0 %v480
    %621 = vmatprep.subr.bf16.mxu0 0
    %622 = vmatpush1.bf16.msra.mxu0 %v479
    %623 = vmatprep.subr.bf16.mxu0 0
    %624 = vmatpush2.bf16.msra.mxu0 %v494
    %625 = vmatprep.subr.bf16.mxu0 0
    %626 = vmatpush2.bf16.msra.mxu0 %v493
    %627 = vmatprep.subr.bf16.mxu0 0
    %628 = vmatpush2.bf16.msra.mxu0 %v492
    %629 = vmatprep.subr.bf16.mxu0 0
    %630 = vmatpush2.bf16.msra.mxu0 %v491
    %631 = vmatprep.subr.bf16.mxu0 0
    %632 = vmatpush2.bf16.msra.mxu0 %v490
    %633 = vmatprep.subr.bf16.mxu0 0
    %634 = vmatpush2.bf16.msra.mxu0 %v489
    %635 = vmatprep.subr.bf16.mxu0 0
    %636 = vmatpush2.bf16.msra.mxu0 %v488
    %637 = vmatprep.subr.bf16.mxu0 0
    %638 = vmatpush2.bf16.msra.mxu0 %v487
    %639 = vmatprep.mubr.bf16.mxu0 %v203
    %640 = vmatmul.mubr.bf16.gmra.mxu0 %v189
    %v641 = vpop.f32.mrf.mxu0
    %v642 = vadd.f32 %v163, %v641
    %v643 = vpop.f32.mrf.mxu0
    %v644 = vpop.f32.mrf.mxu0
    %v645 = vpop.f32.mrf.mxu0
    %646 = vdwg.mxu0
    %647 = vmatprep.subr.bf16.mxu0 0
    %648 = vmatpush1.bf16.msra.mxu0 %v502
    %649 = vmatprep.subr.bf16.mxu0 0
    %650 = vmatpush1.bf16.msra.mxu0 %v501
    %651 = vmatprep.subr.bf16.mxu0 0
    %652 = vmatpush1.bf16.msra.mxu0 %v500
    %653 = vmatprep.subr.bf16.mxu0 0
    %654 = vmatpush1.bf16.msra.mxu0 %v499
    %655 = vmatprep.subr.bf16.mxu0 0
    %656 = vmatpush1.bf16.msra.mxu0 %v498
    %657 = vmatprep.subr.bf16.mxu0 0
    %658 = vmatpush1.bf16.msra.mxu0 %v497
    %659 = vmatprep.subr.bf16.mxu0 0
    %660 = vmatpush1.bf16.msra.mxu0 %v496
    %661 = vmatprep.subr.bf16.mxu0 0
    %662 = vmatpush1.bf16.msra.mxu0 %v495
    %663 = vmatprep.subr.bf16.mxu0 0
    %664 = vmatpush2.bf16.msra.mxu0 %v510
    %665 = vmatprep.subr.bf16.mxu0 0
    %666 = vmatpush2.bf16.msra.mxu0 %v509
    %667 = vmatprep.subr.bf16.mxu0 0
    %668 = vmatpush2.bf16.msra.mxu0 %v508
    %669 = vmatprep.subr.bf16.mxu0 0
    %670 = vmatpush2.bf16.msra.mxu0 %v507
    %671 = vmatprep.subr.bf16.mxu0 0
    %672 = vmatpush2.bf16.msra.mxu0 %v506
    %673 = vmatprep.subr.bf16.mxu0 0
    %674 = vmatpush2.bf16.msra.mxu0 %v505
    %675 = vmatprep.subr.bf16.mxu0 0
    %676 = vmatpush2.bf16.msra.mxu0 %v504
    %677 = vmatprep.subr.bf16.mxu0 0
    %678 = vmatpush2.bf16.msra.mxu0 %v503
    %679 = vmatprep.mubr.bf16.mxu0 %v213
    %680 = vmatmul.mubr.bf16.gmra.mxu0 %v211
    %v681 = vpop.f32.mrf.mxu0
    %v682 = vadd.f32 %v642, %v681
    %v683 = vpop.f32.mrf.mxu0
    %v684 = vpop.f32.mrf.mxu0
    %v685 = vpop.f32.mrf.mxu0
    %686 = vdwg.mxu0
    %687 = vmatprep.subr.bf16.mxu0 0
    %688 = vmatpush1.bf16.msra.mxu0 %v518
    %689 = vmatprep.subr.bf16.mxu0 0
    %690 = vmatpush1.bf16.msra.mxu0 %v517
    %691 = vmatprep.subr.bf16.mxu0 0
    %692 = vmatpush1.bf16.msra.mxu0 %v516
    %693 = vmatprep.subr.bf16.mxu0 0
    %694 = vmatpush1.bf16.msra.mxu0 %v515
    %695 = vmatprep.subr.bf16.mxu0 0
    %696 = vmatpush1.bf16.msra.mxu0 %v514
    %697 = vmatprep.subr.bf16.mxu0 0
    %698 = vmatpush1.bf16.msra.mxu0 %v513
    %699 = vmatprep.subr.bf16.mxu0 0
    %700 = vmatpush1.bf16.msra.mxu0 %v512
    %701 = vmatprep.subr.bf16.mxu0 0
    %702 = vmatpush1.bf16.msra.mxu0 %v511
    %703 = vmatprep.subr.bf16.mxu0 0
    %704 = vmatpush2.bf16.msra.mxu0 %v526
    %705 = vmatprep.subr.bf16.mxu0 0
    %706 = vmatpush2.bf16.msra.mxu0 %v525
    %707 = vmatprep.subr.bf16.mxu0 0
    %708 = vmatpush2.bf16.msra.mxu0 %v524
    %709 = vmatprep.subr.bf16.mxu0 0
    %710 = vmatpush2.bf16.msra.mxu0 %v523
    %711 = vmatprep.subr.bf16.mxu0 0
    %712 = vmatpush2.bf16.msra.mxu0 %v522
    %713 = vmatprep.subr.bf16.mxu0 0
    %714 = vmatpush2.bf16.msra.mxu0 %v521
    %715 = vmatprep.subr.bf16.mxu0 0
    %716 = vmatpush2.bf16.msra.mxu0 %v520
    %717 = vmatprep.subr.bf16.mxu0 0
    %718 = vmatpush2.bf16.msra.mxu0 %v519
    %719 = vmatprep.mubr.bf16.mxu0 %v210
    %720 = vmatmul.mubr.bf16.gmra.mxu0 %v196
    %v721 = vpop.f32.mrf.mxu0
    %v722 = vadd.f32 %v682, %v721
    %v723 = vpop.f32.mrf.mxu0
    %v724 = vpop.f32.mrf.mxu0
    %v725 = vpop.f32.mrf.mxu0
    %726 = vdwg.mxu0
    %727 = vmatprep.subr.bf16.mxu0 0
    %728 = vmatpush1.bf16.msra.mxu0 %v534
    %729 = vmatprep.subr.bf16.mxu0 0
    %730 = vmatpush1.bf16.msra.mxu0 %v533
    %731 = vmatprep.subr.bf16.mxu0 0
    %732 = vmatpush1.bf16.msra.mxu0 %v532
    %733 = vmatprep.subr.bf16.mxu0 0
    %734 = vmatpush1.bf16.msra.mxu0 %v531
    %735 = vmatprep.subr.bf16.mxu0 0
    %736 = vmatpush1.bf16.msra.mxu0 %v530
    %737 = vmatprep.subr.bf16.mxu0 0
    %738 = vmatpush1.bf16.msra.mxu0 %v529
    %739 = vmatprep.subr.bf16.mxu0 0
    %740 = vmatpush1.bf16.msra.mxu0 %v528
    %741 = vmatprep.subr.bf16.mxu0 0
    %742 = vmatpush1.bf16.msra.mxu0 %v527
    %743 = vmatprep.subr.bf16.mxu0 0
    %744 = vmatpush2.bf16.msra.mxu0 %v542
    %745 = vmatprep.subr.bf16.mxu0 0
    %746 = vmatpush2.bf16.msra.mxu0 %v541
    %747 = vmatprep.subr.bf16.mxu0 0
    %748 = vmatpush2.bf16.msra.mxu0 %v540
    %749 = vmatprep.subr.bf16.mxu0 0
    %750 = vmatpush2.bf16.msra.mxu0 %v539
    %751 = vmatprep.subr.bf16.mxu0 0
    %752 = vmatpush2.bf16.msra.mxu0 %v538
    %753 = vmatprep.subr.bf16.mxu0 0
    %754 = vmatpush2.bf16.msra.mxu0 %v537
    %755 = vmatprep.subr.bf16.mxu0 0
    %756 = vmatpush2.bf16.msra.mxu0 %v536
    %757 = vmatprep.subr.bf16.mxu0 0
    %758 = vmatpush2.bf16.msra.mxu0 %v535
    %759 = vmatprep.mubr.bf16.mxu0 %v214
    %760 = vmatmul.mubr.bf16.gmra.mxu0 %v212
    %v761 = vpop.f32.mrf.mxu0
    %v762 = vadd.f32 %v722, %v761
    %v763 = vpop.f32.mrf.mxu0
    %v764 = vpop.f32.mrf.mxu0
    %v765 = vpop.f32.mrf.mxu0
    %766 = vdwg.mxu0
    %v767 = vmax.f32 %v762, 0.0
    %v768 = vld [vmem:[%s4] sm:$0xff]
    %v769 = vld [vmem:[%s4 + $0x8] sm:$0xff]
    %v770 = vld [vmem:[%s4 + $0x10] sm:$0xff]
    %v771 = vld [vmem:[%s4 + $0x18] sm:$0xff]
    %v772 = vld [vmem:[%s5] sm:$0x1]
    %v774 = vlaneseq
    %v775 = vshrl.u32 %v774, 7
    %v776 = vsub.s32 0, %v775
    %v777 = vrot.slane %v772, %v776
    %vm779 = vcmask 261120
    %v781 = vsel %vm779, %v767, 0
    %783 = vmatprep.subr.mxu0 0.0
    %784 = vmatpush1.msra.mxu0 0.0
    %785 = vmatprep.subr.mxu0 0.0
    %786 = vmatpush1.msra.mxu0 0.0
    %787 = vmatprep.subr.mxu0 0.0
    %788 = vmatpush1.msra.mxu0 0.0
    %789 = vmatprep.subr.mxu0 0.0
    %790 = vmatpush1.msra.mxu0 0.0
    %791 = vmatprep.subr.mxu0 0.0
    %792 = vmatpush1.msra.mxu0 0.0
    %793 = vmatprep.subr.mxu0 0.0
    %794 = vmatpush1.msra.mxu0 0.0
    %795 = vmatprep.subr.mxu0 0.0
    %796 = vmatpush1.msra.mxu0 0.0
    %797 = vmatprep.subr.mxu0 0.0
    %798 = vmatpush1.msra.mxu0 0.0
    %799 = vmatprep.subr.mxu0 0.0
    %800 = vmatpush1.msra.mxu0 0.0
    %801 = vmatprep.subr.mxu0 0.0
    %802 = vmatpush1.msra.mxu0 0.0
    %803 = vmatprep.subr.mxu0 0.0
    %804 = vmatpush1.msra.mxu0 0.0
    %805 = vmatprep.subr.mxu0 0.0
    %806 = vmatpush1.msra.mxu0 0.0
    %807 = vmatprep.subr.mxu0 0.0
    %808 = vmatpush1.msra.mxu0 %v771
    %809 = vmatprep.subr.mxu0 0.0
    %810 = vmatpush1.msra.mxu0 %v770
    %811 = vmatprep.subr.mxu0 0.0
    %812 = vmatpush1.msra.mxu0 %v769
    %813 = vmatprep.subr.mxu0 0.0
    %814 = vmatpush1.msra.mxu0 %v768
    %815 = vmatprep.subr.mxu0 0.0
    %816 = vmatpush2.msra.mxu0 0.0
    %817 = vmatprep.subr.mxu0 0.0
    %818 = vmatpush2.msra.mxu0 0.0
    %819 = vmatprep.subr.mxu0 0.0
    %820 = vmatpush2.msra.mxu0 0.0
    %821 = vmatprep.subr.mxu0 0.0
    %822 = vmatpush2.msra.mxu0 0.0
    %823 = vmatprep.subr.mxu0 0.0
    %824 = vmatpush2.msra.mxu0 0.0
    %825 = vmatprep.subr.mxu0 0.0
    %826 = vmatpush2.msra.mxu0 0.0
    %827 = vmatprep.subr.mxu0 0.0
    %828 = vmatpush2.msra.mxu0 0.0
    %829 = vmatprep.subr.mxu0 0.0
    %830 = vmatpush2.msra.mxu0 0.0
    %831 = vmatprep.subr.mxu0 0.0
    %832 = vmatpush2.msra.mxu0 0.0
    %833 = vmatprep.subr.mxu0 0.0
    %834 = vmatpush2.msra.mxu0 0.0
    %835 = vmatprep.subr.mxu0 0.0
    %836 = vmatpush2.msra.mxu0 0.0
    %837 = vmatprep.subr.mxu0 0.0
    %838 = vmatpush2.msra.mxu0 0.0
    %839 = vmatprep.subr.mxu0 0.0
    %840 = vmatpush2.msra.mxu0 0.0
    %841 = vmatprep.subr.mxu0 0.0
    %842 = vmatpush2.msra.mxu0 0.0
    %843 = vmatprep.subr.mxu0 0.0
    %844 = vmatpush2.msra.mxu0 0.0
    %845 = vmatprep.subr.mxu0 0.0
    %846 = vmatpush2.msra.mxu0 0.0
    %847 = vmatprep.mubr.f32.mxu0 0.0
    %848 = vmatmul.mubr.f32.gmra.mxu0 %v781
    %v849 = vpop.f32.mrf.mxu0
    %v850 = vadd.f32 %v777, %v849
    %v851 = vpop.f32.mrf.mxu0
    %852 = vdwg.mxu0
    %853 = vst [vmem:[#allocation3] sm:$0x3] %v850
    %s854 = sld [smem:[#allocation2]]
    %v855 = vlaneseq
    %v856 = vand.u32 %v855, 127
    %v857 = vstv %s854
    %vm858 = vcmp.eq.s32.totalorder %v856, %v857
    %v859 = vsel %vm858, %v850, 0.0
    %vm860 = vcmask 1041408
    %v861 = vsel %vm860, %v859, 0.0
    %862 = vadd.xlane.f32.xlu0 %v861
    %v863 = vpop.xlane.xlu0 %862
    %vm864 = vmxor %vm858, 1
    %vm865 = vcmp.lt.s32.totalorder %v856, 10
    %vm866 = vmand %vm864, %vm865
    %v867 = vsub.f32 %v850, %v863
    %vm868 = vcmp.ge.f32.partialorder %v867, 0.0
    %vm869 = vmand %vm866, %vm868
    %v870 = vsel %vm869, 1.0, 0.0
    %v871 = vsel %vm860, %v870, -inf
    %872 = vmax.xlane.f32.xlu0 %v871
    %v873 = vpop.xlane.xlu0 %872
    %v874 = vrot.slane %v873, 4
    %v875 = vmax.f32 %v873, %v874
    %v876 = vrot.slane %v875, 2
    %v877 = vmax.f32 %v875, %v876
    %v878 = vrot.slane %v877, 1
    %v879 = vmax.f32 %v877, %v878
    %s880 = vtos %v879
    %p881 = scmp.gt.f32.partialorder %s880, 0.0
    %s882 = scalar_select %p881, 1, 0
    %s883 = scalar_lea.smem [#allocation6], 0
    %884 = sst [smem:[%s883]] %s882
    // Predicated region
    $region26: #{adversarial_check.1} parent=1 // pred_check
      _
    $region27: #{adversarial_check.1} parent=1 // pred_check_branch
      %886 = sbr.rel (0) target = $region29
    $region28: #{adversarial_check.1} parent=1 // pred_region
      %s888 = ssub.s32 32, 32
      %889 = vsyncadd [#allocation4], %s888
      %s891 = sshll.u32 [#allocation3], 4
      %s892 = int_to_ptr.vmem [resolvable:$true] %s891
      %894 = dma.vmem_to_hbm [thread:$0]  %s892, 32, %s6, [#allocation4]
    $region29: #{adversarial_check.1} parent=1 // pred_fallthru
      _
    // Predicated region
    $region30: #{adversarial_check.1} parent=1 // pred_check
      _
    $region31: #{adversarial_check.1} parent=1 // pred_check_branch
      %896 = sbr.rel (0) target = $region33
    $region32: #{adversarial_check.1} parent=1 // pred_region
      %s898 = ssub.s32 16, 16
      %899 = vsyncadd [#allocation5], %s898
      %902 = dma.smem_to_hbm [#allocation6], 16, %s7, [#allocation5]
    $region33: #{adversarial_check.1} parent=1 // pred_fallthru
      _
    // Predicated region
    $region34: #{adversarial_check.1} parent=1 // pred_check
      _
    $region35: #{adversarial_check.1} parent=1 // pred_check_branch
      %904 = sbr.rel (0) target = $region37
    $region36: #{adversarial_check.1} parent=1 // pred_region
      %905 = dma.done [#allocation4], 32
    $region37: #{adversarial_check.1} parent=1 // pred_fallthru
      _
    // Predicated region
    $region38: #{adversarial_check.1} parent=1 // pred_check
      _
    $region39: #{adversarial_check.1} parent=1 // pred_check_branch
      %907 = sbr.rel (0) target = $region41
    $region40: #{adversarial_check.1} parent=1 // pred_region
      %908 = dma.done [#allocation5], 16
    $region41: #{adversarial_check.1} parent=1 // pred_fallthru
      _
    %909 = sfence
    %910 = vsyncpa [#allocation4], 1
    %911 = vsyncpa [#allocation5], 1

</llo_original>
